<compile_context>
chip_gen: v5e
topology: v5e:2x2
jax: 0.10.0
libtpu: 0.0.40
codegen_flags: <defaults>
</compile_context>

<pallas_src>
import functools

import jax
import jax.numpy as jnp
from jax.experimental import pallas as pl
from jax.experimental.pallas import tpu as pltpu


# ----------------------------------------------------------------------------
# Small helpers
# ----------------------------------------------------------------------------
def _round_up(n, m):
    return ((n + m - 1) // m) * m


def _cdiv(a, b):
    return (a + b - 1) // b


# ----------------------------------------------------------------------------
# Fused kernel: all active modalities processed in every grid step.
# ----------------------------------------------------------------------------
def _make_fused_kernel(n_mod, c, out_w, modes, matmul_dtype):
    """Kernel refs (in order):
         x_0..x_{n-1} : (TM, D_in_m)   raw f32 row tiles (cast in-kernel)
         w_0..w_{n-1} : (D_in_m, C)    raw f32 weights (grid-invariant)
         p            : (P_rows, C) f32; rows 3m / 3m+1 / 3m+2 = bias/gamma/beta
         o            : (TM, out_w)    lane-dense output slab
    """
    inv_c = 1.0 / float(c)
    aligned = (c % 128 == 0)

    def kernel(*refs):
        x_refs = refs[:n_mod]
        w_refs = refs[n_mod:2 * n_mod]
        p_ref = refs[2 * n_mod]
        o_ref = refs[2 * n_mod + 1]

        p = p_ref[...]  # tiny; lives in vregs for the whole step
        pieces = []

        for m in range(n_mod):
            # Cast raw f32 operands to the MXU dtype in-register (no HBM-side
            # pad/cast round trips); accumulate in f32.
            x = x_refs[m][...].astype(matmul_dtype)
            w = w_refs[m][...].astype(matmul_dtype)
            y = jnp.dot(x, w, preferred_element_type=jnp.float32)
            y = y + p[3 * m:3 * m + 1, :]          # bias

            if modes[m] == "l2":
                # F.normalize(dim=-1): y * rsqrt(max(sum(y^2), eps^2)).
                ss = jnp.sum(y * y, axis=-1, keepdims=True)
                out = y * jax.lax.rsqrt(jnp.maximum(ss, 1e-24))
            else:
                # LayerNorm (eps=1e-5), two-pass (centered) stats in f32.
                mean = jnp.sum(y, axis=-1, keepdims=True) * inv_c
                yc = y - mean
                var = jnp.sum(yc * yc, axis=-1, keepdims=True) * inv_c
                out = (yc * jax.lax.rsqrt(var + 1e-5)
                       * p[3 * m + 1:3 * m + 2, :]
                       + p[3 * m + 2:3 * m + 3, :])

            out = out.astype(o_ref.dtype)
            if aligned:
                # 128-aligned static-slice store: modality m owns [m*c,(m+1)*c).
                o_ref[:, m * c:(m + 1) * c] = out
            else:
                pieces.append(out)

        if not aligned:
            # Sub-128 common_dim (toy shapes): lane-concatenate the pieces and
            # zero-fill the tail so a single unmasked full-width store is used.
            tail = out_w - n_mod * c
            if tail > 0:
                pieces.append(jnp.zeros((pieces[0].shape[0], tail), o_ref.dtype))
            o_ref[...] = jnp.concatenate(pieces, axis=-1)

    return kernel


# ----------------------------------------------------------------------------
# Module-equivalent wrapper (whole forward is one jit; presence pattern static)
# ----------------------------------------------------------------------------
@functools.partial(jax.jit,
                   static_argnames=("matmul_dtype", "out_dtype", "max_tm"))
def cross_modal_embedding_alignment(params, vit_patches=None, cnn_patches=None,
                                    text_embeddings=None, expert_tokens=None,
                                    *, matmul_dtype=jnp.bfloat16,
                                    out_dtype=jnp.float32, max_tm=512):
    """Forward of CrossModalEmbeddingAlignment. Returns a 4-tuple
    (vit_proj, cnn_proj, txt_proj, expert_proj); entries are None if the
    corresponding input is None."""
    c = params["vit_proj"][0].shape[1]          # common_dim

    # Collect active modalities in output-slot order.
    specs = []  # (slot, x3d, w, b, gamma, beta, mode)
    if vit_patches is not None:
        w, b = params["vit_proj"]
        specs.append((0, vit_patches, w, b, None, None, "l2"))
    if cnn_patches is not None:
        w, b = params["cnn_proj"]
        specs.append((1, cnn_patches, w, b, None, None, "l2"))
    if text_embeddings is not None:
        w, b = params["text_proj"]
        specs.append((2, text_embeddings, w, b, None, None, "l2"))
    if expert_tokens is not None:
        w, b = params["expert_proj"]
        g, be = params["expert_norm"]
        specs.append((3, expert_tokens, w, b, g, be, "ln"))
    if not specs:
        return (None, None, None, None)

    n = len(specs)
    out_w = _round_up(n * c, 128)

    # Balanced row tiling: grid count first, then tile size (16-row multiples).
    m_max = max(s[1].shape[0] * s[1].shape[1] for s in specs)
    m_base = _round_up(m_max, 8)
    grid_m = _cdiv(m_base, max_tm)
    if grid_m > 1 and grid_m % 2 == 1:
        grid_m += 1        # v7x: even grid so both TensorCores get row tiles
    tm = _round_up(_cdiv(m_base, grid_m), 16)
    m_pad = grid_m * tm

    # Raw inputs/weights (no K-padding, no dtype cast); only rows are padded to
    # the tile grid. Bias/gamma/beta packed into one small (rows, C) f32 ref.
    xs, ws, modes, prow_list = [], [], [], []
    for (_slot, x3d, w, b, g, be, mode) in specs:
        bsz, seq, d_in = x3d.shape
        x2d = x3d.reshape(bsz * seq, d_in)
        if bsz * seq != m_pad:
            x2d = jnp.pad(x2d, ((0, m_pad - bsz * seq), (0, 0)))
        xs.append(x2d)
        ws.append(w)
        modes.append(mode)
        prow_list.append(b)
        prow_list.append(g if g is not None else jnp.zeros_like(b))
        prow_list.append(be if be is not None else jnp.zeros_like(b))

    pmat = jnp.stack(prow_list, axis=0).astype(jnp.float32)
    prows = _round_up(3 * n, 8)
    if prows != 3 * n:
        pmat = jnp.pad(pmat, ((0, prows - 3 * n), (0, 0)))

    kernel = _make_fused_kernel(n, c, out_w, tuple(modes), matmul_dtype)

    in_specs = [pl.BlockSpec((tm, x.shape[1]), lambda i: (i, 0)) for x in xs]
    in_specs += [pl.BlockSpec(w.shape, lambda i: (0, 0)) for w in ws]
    in_specs += [pl.BlockSpec(pmat.shape, lambda i: (0, 0))]

    # Advisory cost estimate so XLA can overlap surrounding ops with the call.
    flops = sum(2 * m_pad * x.shape[1] * c for x in xs) + 8 * m_pad * n * c
    bytes_accessed = (sum(x.size * x.dtype.itemsize for x in xs)
                      + sum(w.size * w.dtype.itemsize for w in ws)
                      + pmat.size * 4
                      + m_pad * out_w * jnp.dtype(out_dtype).itemsize)
    cost = pl.CostEstimate(flops=flops, transcendentals=n * m_pad,
                           bytes_accessed=bytes_accessed)

    out = pl.pallas_call(
        kernel,
        out_shape=jax.ShapeDtypeStruct((m_pad, out_w), out_dtype),
        grid_spec=pltpu.PrefetchScalarGridSpec(
            num_scalar_prefetch=0,
            grid=(grid_m,),
            in_specs=in_specs,
            out_specs=pl.BlockSpec((tm, out_w), lambda i: (i, 0)),
        ),
        compiler_params=pltpu.CompilerParams(
            dimension_semantics=("parallel",),
            # v7x has 64 MiB physical VMEM -> keep headroom at 48 MiB with
            # max_tm<=512. On v6e (128 MiB) raise this (64-100 MiB) together
            # with max_tm=1024 when D_in/common_dim scale to ~1K.
            vmem_limit_bytes=48 * 1024 * 1024,
        ),
        cost_estimate=cost,
    )(*xs, *ws, pmat)

    # Slice each modality's contiguous column block back to [B, S, common_dim].
    results = [None, None, None, None]
    for j, (slot, x3d, *_rest) in enumerate(specs):
        bsz, seq, _ = x3d.shape
        o = out[: bsz * seq, j * c: (j + 1) * c]
        results[slot] = o.reshape(bsz, seq, c)
    return tuple(results)


# ----------------------------------------------------------------------------
# Parameter init (shapes match the nn.Module)
# ----------------------------------------------------------------------------
def init_params(key, common_dim, cnn_dim, vit_dim, txt_dim, expert_dim):
    ks = jax.random.split(key, 8)

    def linear(kw, kb, d_in, d_out):
        bound = 1.0 / jnp.sqrt(d_in)
        w = jax.random.uniform(kw, (d_in, d_out), jnp.float32, -bound, bound)
        b = jax.random.uniform(kb, (d_out,), jnp.float32, -bound, bound)
        return w, b

    params = {}
    params["vit_proj"] = linear(ks[0], ks[1], vit_dim, common_dim)
    params["cnn_proj"] = linear(ks[2], ks[3], cnn_dim, common_dim)
    params["text_proj"] = linear(ks[4], ks[5], txt_dim, common_dim)
    params["expert_proj"] = linear(ks[6], ks[7], expert_dim, common_dim)
    # expert LayerNorm (the only norm actually used in forward).
    params["expert_norm"] = (jnp.ones((common_dim,), jnp.float32),
                             jnp.zeros((common_dim,), jnp.float32))
    # cnn_norm / vit_norm / text_norm exist in __init__ but are unused in forward.
    return params


# ----------------------------------------------------------------------------
# Plain-JAX reference (torch semantics; same matmul operand dtype as kernel)
# ----------------------------------------------------------------------------
def _ref_forward(params, vit, cnn, txt, expert, matmul_dtype=jnp.bfloat16):
    def mm(x, w, b):
        y = jnp.dot(x.astype(matmul_dtype), w.astype(matmul_dtype),
                    preferred_element_type=jnp.float32)
        return y + b

    def l2(x):
        nrm = jnp.sqrt(jnp.sum(x * x, axis=-1, keepdims=True))
        return x / jnp.maximum(nrm, 1e-12)

    def ln(x, g, b):
        m = jnp.mean(x, axis=-1, keepdims=True)
        v = jnp.mean((x - m) ** 2, axis=-1, keepdims=True)
        return (x - m) / jnp.sqrt(v + 1e-5) * g + b

    outs = [None, None, None, None]
    if vit is not None:
        w, b = params["vit_proj"]; outs[0] = l2(mm(vit, w, b))
    if cnn is not None:
        w, b = params["cnn_proj"]; outs[1] = l2(mm(cnn, w, b))
    if txt is not None:
        w, b = params["text_proj"]; outs[2] = l2(mm(txt, w, b))
    if expert is not None:
        w, b = params["expert_proj"]; g, be = params["expert_norm"]
        outs[3] = ln(mm(expert, w, b), g, be)
    return tuple(outs)


# ----------------------------------------------------------------------------
if __name__ == "__main__":
    # Small, module-consistent shapes (common_dim=32; per-modality D_in 48/64).
    B, S = 2, 8
    COMMON, CNN_D, VIT_D, TXT_D, EXP_D = 32, 64, 48, 48, 48

    key = jax.random.PRNGKey(0)
    kp, k1, k2, k3, k4 = jax.random.split(key, 5)
    params = init_params(kp, COMMON, CNN_D, VIT_D, TXT_D, EXP_D)

    vit_patches = jax.random.normal(k1, (B, S, VIT_D), jnp.float32)
    cnn_patches = jax.random.normal(k2, (B, S, CNN_D), jnp.float32)
    text_embeddings = jax.random.normal(k3, (B, S, TXT_D), jnp.float32)
    expert_tokens = jax.random.normal(k4, (B, S, EXP_D), jnp.float32)

    # Check both matmul operand dtypes (f32 path, and the bf16 MXU fast path).
    for md, tol in ((jnp.float32, 1e-4), (jnp.bfloat16, 1e-3)):
        outs = cross_modal_embedding_alignment(
            params, vit_patches, cnn_patches, text_embeddings, expert_tokens,
            matmul_dtype=md)
        outs = jax.block_until_ready(outs)
        refs = _ref_forward(params, vit_patches, cnn_patches, text_embeddings,
                            expert_tokens, matmul_dtype=md)
        for o, r in zip(outs, refs):
            assert o.shape == r.shape
            assert float(jnp.max(jnp.abs(o - r))) < tol, "mismatch vs reference"

    # Subset call (vit/text absent) exercises the None-handling path.
    outs2 = cross_modal_embedding_alignment(
        params, None, cnn_patches, None, expert_tokens)
    outs2 = jax.block_until_ready([o for o in outs2 if o is not None])
    refs2 = _ref_forward(params, None, cnn_patches, None, expert_tokens,
                         matmul_dtype=jnp.bfloat16)
    assert len(outs2) == 2
    assert float(jnp.max(jnp.abs(outs2[0] - refs2[1]))) < 1e-3
    assert float(jnp.max(jnp.abs(outs2[1] - refs2[3]))) < 1e-3

    print("KERNEL_OK")
</pallas_src>

<mosaic_0001>
module attributes {stable_mosaic.version = 11 : i64} {
  func.func @kernel(%arg0: i32, %arg1: memref<16x48xf32, #tpu.memory_space<vmem>>, %arg2: memref<16x64xf32, #tpu.memory_space<vmem>>, %arg3: memref<16x48xf32, #tpu.memory_space<vmem>>, %arg4: memref<16x48xf32, #tpu.memory_space<vmem>>, %arg5: memref<48x32xf32, #tpu.memory_space<vmem>>, %arg6: memref<64x32xf32, #tpu.memory_space<vmem>>, %arg7: memref<48x32xf32, #tpu.memory_space<vmem>>, %arg8: memref<48x32xf32, #tpu.memory_space<vmem>>, %arg9: memref<16x32xf32, #tpu.memory_space<vmem>>, %arg10: memref<16x128xf32, #tpu.memory_space<vmem>>) attributes {dimension_semantics = [#tpu.dimension_semantics<parallel>], iteration_bounds = array<i64: 1>, scalar_prefetch = 0 : i64, scratch_operands = 0 : i64, tpu.core_type = #tpu.core_type<tc>, window_params = [{transform_indices = @transform_0, window_bounds = array<i64: 16, 48>}, {transform_indices = @transform_1, window_bounds = array<i64: 16, 64>}, {transform_indices = @transform_2, window_bounds = array<i64: 16, 48>}, {transform_indices = @transform_3, window_bounds = array<i64: 16, 48>}, {pipeline_mode = #tpu.pipeline_mode<synchronous>, transform_indices = @transform_4, window_bounds = array<i64: 48, 32>}, {pipeline_mode = #tpu.pipeline_mode<synchronous>, transform_indices = @transform_5, window_bounds = array<i64: 64, 32>}, {pipeline_mode = #tpu.pipeline_mode<synchronous>, transform_indices = @transform_6, window_bounds = array<i64: 48, 32>}, {pipeline_mode = #tpu.pipeline_mode<synchronous>, transform_indices = @transform_7, window_bounds = array<i64: 48, 32>}, {pipeline_mode = #tpu.pipeline_mode<synchronous>, transform_indices = @transform_8, window_bounds = array<i64: 16, 32>}, {transform_indices = @transform_9, window_bounds = array<i64: 16, 128>}]} {
    %c0 = arith.constant 0 : index
    %c0_0 = arith.constant 0 : index
    %0 = vector.load %arg9[%c0, %c0_0] : memref<16x32xf32, #tpu.memory_space<vmem>>, vector<16x32xf32>
    %c0_1 = arith.constant 0 : index
    %c0_2 = arith.constant 0 : index
    %1 = vector.load %arg1[%c0_1, %c0_2] : memref<16x48xf32, #tpu.memory_space<vmem>>, vector<16x48xf32>
    %c0_3 = arith.constant 0 : index
    %c0_4 = arith.constant 0 : index
    %2 = vector.load %arg5[%c0_3, %c0_4] : memref<48x32xf32, #tpu.memory_space<vmem>>, vector<48x32xf32>
    %cst = arith.constant dense<0.000000e+00> : vector<16x32xf32>
    %3 = tpu.matmul %1, %2, %cst {dimension_numbers = #tpu.dot_dimension_numbers<[1], [0], [0], [1], [0, 0, 1, 1], [], []>} : vector<16x48xf32>, vector<48x32xf32>, vector<16x32xf32> -> vector<16x32xf32>
    %4 = vector.extract_strided_slice %0 {offsets = [0, 0], sizes = [1, 32], strides = [1, 1]} : vector<16x32xf32> to vector<1x32xf32>
    %5 = vector.broadcast %4 : vector<1x32xf32> to vector<16x32xf32>
    %6 = arith.addf %3, %5 : vector<16x32xf32>
    %7 = arith.mulf %6, %6 : vector<16x32xf32>
    %cst_5 = arith.constant dense<0.000000e+00> : vector<16xf32>
    %8 = vector.multi_reduction <add>, %7, %cst_5 [1] : vector<16x32xf32> to vector<16xf32>
    %9 = vector.shape_cast %8 : vector<16xf32> to vector<16x1xf32>
    %cst_6 = arith.constant 1.000000e-24 : f32
    %10 = vector.broadcast %cst_6 : f32 to vector<16x1xf32>
    %11 = arith.maximumf %9, %10 : vector<16x1xf32>
    %12 = math.rsqrt %11 : vector<16x1xf32>
    %13 = vector.broadcast %12 : vector<16x1xf32> to vector<16x32xf32>
    %14 = arith.mulf %6, %13 : vector<16x32xf32>
    %c0_7 = arith.constant 0 : index
    %c0_8 = arith.constant 0 : index
    %15 = vector.load %arg2[%c0_7, %c0_8] : memref<16x64xf32, #tpu.memory_space<vmem>>, vector<16x64xf32>
    %c0_9 = arith.constant 0 : index
    %c0_10 = arith.constant 0 : index
    %16 = vector.load %arg6[%c0_9, %c0_10] : memref<64x32xf32, #tpu.memory_space<vmem>>, vector<64x32xf32>
    %cst_11 = arith.constant dense<0.000000e+00> : vector<16x32xf32>
    %17 = tpu.matmul %15, %16, %cst_11 {dimension_numbers = #tpu.dot_dimension_numbers<[1], [0], [0], [1], [0, 0, 1, 1], [], []>} : vector<16x64xf32>, vector<64x32xf32>, vector<16x32xf32> -> vector<16x32xf32>
    %18 = vector.extract_strided_slice %0 {offsets = [3, 0], sizes = [1, 32], strides = [1, 1]} : vector<16x32xf32> to vector<1x32xf32>
    %19 = vector.broadcast %18 : vector<1x32xf32> to vector<16x32xf32>
    %20 = arith.addf %17, %19 : vector<16x32xf32>
    %21 = arith.mulf %20, %20 : vector<16x32xf32>
    %cst_12 = arith.constant dense<0.000000e+00> : vector<16xf32>
    %22 = vector.multi_reduction <add>, %21, %cst_12 [1] : vector<16x32xf32> to vector<16xf32>
    %23 = vector.shape_cast %22 : vector<16xf32> to vector<16x1xf32>
    %cst_13 = arith.constant 1.000000e-24 : f32
    %24 = vector.broadcast %cst_13 : f32 to vector<16x1xf32>
    %25 = arith.maximumf %23, %24 : vector<16x1xf32>
    %26 = math.rsqrt %25 : vector<16x1xf32>
    %27 = vector.broadcast %26 : vector<16x1xf32> to vector<16x32xf32>
    %28 = arith.mulf %20, %27 : vector<16x32xf32>
    %c0_14 = arith.constant 0 : index
    %c0_15 = arith.constant 0 : index
    %29 = vector.load %arg3[%c0_14, %c0_15] : memref<16x48xf32, #tpu.memory_space<vmem>>, vector<16x48xf32>
    %c0_16 = arith.constant 0 : index
    %c0_17 = arith.constant 0 : index
    %30 = vector.load %arg7[%c0_16, %c0_17] : memref<48x32xf32, #tpu.memory_space<vmem>>, vector<48x32xf32>
    %cst_18 = arith.constant dense<0.000000e+00> : vector<16x32xf32>
    %31 = tpu.matmul %29, %30, %cst_18 {dimension_numbers = #tpu.dot_dimension_numbers<[1], [0], [0], [1], [0, 0, 1, 1], [], []>} : vector<16x48xf32>, vector<48x32xf32>, vector<16x32xf32> -> vector<16x32xf32>
    %32 = vector.extract_strided_slice %0 {offsets = [6, 0], sizes = [1, 32], strides = [1, 1]} : vector<16x32xf32> to vector<1x32xf32>
    %33 = vector.broadcast %32 : vector<1x32xf32> to vector<16x32xf32>
    %34 = arith.addf %31, %33 : vector<16x32xf32>
    %35 = arith.mulf %34, %34 : vector<16x32xf32>
    %cst_19 = arith.constant dense<0.000000e+00> : vector<16xf32>
    %36 = vector.multi_reduction <add>, %35, %cst_19 [1] : vector<16x32xf32> to vector<16xf32>
    %37 = vector.shape_cast %36 : vector<16xf32> to vector<16x1xf32>
    %cst_20 = arith.constant 1.000000e-24 : f32
    %38 = vector.broadcast %cst_20 : f32 to vector<16x1xf32>
    %39 = arith.maximumf %37, %38 : vector<16x1xf32>
    %40 = math.rsqrt %39 : vector<16x1xf32>
    %41 = vector.broadcast %40 : vector<16x1xf32> to vector<16x32xf32>
    %42 = arith.mulf %34, %41 : vector<16x32xf32>
    %c0_21 = arith.constant 0 : index
    %c0_22 = arith.constant 0 : index
    %43 = vector.load %arg4[%c0_21, %c0_22] : memref<16x48xf32, #tpu.memory_space<vmem>>, vector<16x48xf32>
    %c0_23 = arith.constant 0 : index
    %c0_24 = arith.constant 0 : index
    %44 = vector.load %arg8[%c0_23, %c0_24] : memref<48x32xf32, #tpu.memory_space<vmem>>, vector<48x32xf32>
    %cst_25 = arith.constant dense<0.000000e+00> : vector<16x32xf32>
    %45 = tpu.matmul %43, %44, %cst_25 {dimension_numbers = #tpu.dot_dimension_numbers<[1], [0], [0], [1], [0, 0, 1, 1], [], []>} : vector<16x48xf32>, vector<48x32xf32>, vector<16x32xf32> -> vector<16x32xf32>
    %46 = vector.extract_strided_slice %0 {offsets = [9, 0], sizes = [1, 32], strides = [1, 1]} : vector<16x32xf32> to vector<1x32xf32>
    %47 = vector.broadcast %46 : vector<1x32xf32> to vector<16x32xf32>
    %48 = arith.addf %45, %47 : vector<16x32xf32>
    %cst_26 = arith.constant dense<0.000000e+00> : vector<16xf32>
    %49 = vector.multi_reduction <add>, %48, %cst_26 [1] : vector<16x32xf32> to vector<16xf32>
    %50 = vector.shape_cast %49 : vector<16xf32> to vector<16x1xf32>
    %cst_27 = arith.constant 3.125000e-02 : f32
    %51 = vector.broadcast %cst_27 : f32 to vector<16x1xf32>
    %52 = arith.mulf %50, %51 : vector<16x1xf32>
    %53 = vector.broadcast %52 : vector<16x1xf32> to vector<16x32xf32>
    %54 = arith.subf %48, %53 : vector<16x32xf32>
    %55 = arith.mulf %54, %54 : vector<16x32xf32>
    %cst_28 = arith.constant dense<0.000000e+00> : vector<16xf32>
    %56 = vector.multi_reduction <add>, %55, %cst_28 [1] : vector<16x32xf32> to vector<16xf32>
    %57 = vector.shape_cast %56 : vector<16xf32> to vector<16x1xf32>
    %cst_29 = arith.constant 3.125000e-02 : f32
    %58 = vector.broadcast %cst_29 : f32 to vector<16x1xf32>
    %59 = arith.mulf %57, %58 : vector<16x1xf32>
    %cst_30 = arith.constant 9.99999974E-6 : f32
    %60 = vector.broadcast %cst_30 : f32 to vector<16x1xf32>
    %61 = arith.addf %59, %60 : vector<16x1xf32>
    %62 = math.rsqrt %61 : vector<16x1xf32>
    %63 = vector.broadcast %62 : vector<16x1xf32> to vector<16x32xf32>
    %64 = arith.mulf %54, %63 : vector<16x32xf32>
    %65 = vector.extract_strided_slice %0 {offsets = [10, 0], sizes = [1, 32], strides = [1, 1]} : vector<16x32xf32> to vector<1x32xf32>
    %66 = vector.broadcast %65 : vector<1x32xf32> to vector<16x32xf32>
    %67 = arith.mulf %64, %66 : vector<16x32xf32>
    %68 = vector.extract_strided_slice %0 {offsets = [11, 0], sizes = [1, 32], strides = [1, 1]} : vector<16x32xf32> to vector<1x32xf32>
    %69 = vector.broadcast %68 : vector<1x32xf32> to vector<16x32xf32>
    %70 = arith.addf %67, %69 : vector<16x32xf32>
    %71 = tpu.concatenate %14, %28, %42, %70 in 1 : vector<16x32xf32>, vector<16x32xf32>, vector<16x32xf32>, vector<16x32xf32> -> vector<16x128xf32>
    %c0_31 = arith.constant 0 : index
    %c0_32 = arith.constant 0 : index
    %72 = vector.load %arg10[%c0_31, %c0_32] : memref<16x128xf32, #tpu.memory_space<vmem>>, vector<16x128xf32>
    tpu.vector_store %arg10[%c0_31, %c0_32], %71 {strides = array<i32>} : memref<16x128xf32, #tpu.memory_space<vmem>>, vector<16x128xf32>,
    return
  }
  func.func @transform_0(%arg0: i32) -> (i32, i32) {
    %c0_i32 = arith.constant 0 : i32
    %c0_i32_0 = arith.constant 0 : i32
    return %arg0, %c0_i32 : i32, i32
  }
  func.func @transform_1(%arg0: i32) -> (i32, i32) {
    %c0_i32 = arith.constant 0 : i32
    %c0_i32_0 = arith.constant 0 : i32
    return %arg0, %c0_i32 : i32, i32
  }
  func.func @transform_2(%arg0: i32) -> (i32, i32) {
    %c0_i32 = arith.constant 0 : i32
    %c0_i32_0 = arith.constant 0 : i32
    return %arg0, %c0_i32 : i32, i32
  }
  func.func @transform_3(%arg0: i32) -> (i32, i32) {
    %c0_i32 = arith.constant 0 : i32
    %c0_i32_0 = arith.constant 0 : i32
    return %arg0, %c0_i32 : i32, i32
  }
  func.func @transform_4(%arg0: i32) -> (i32, i32) {
    %c0_i32 = arith.constant 0 : i32
    %c0_i32_0 = arith.constant 0 : i32
    %c0_i32_1 = arith.constant 0 : i32
    return %c0_i32, %c0_i32_0 : i32, i32
  }
  func.func @transform_5(%arg0: i32) -> (i32, i32) {
    %c0_i32 = arith.constant 0 : i32
    %c0_i32_0 = arith.constant 0 : i32
    %c0_i32_1 = arith.constant 0 : i32
    return %c0_i32, %c0_i32_0 : i32, i32
  }
  func.func @transform_6(%arg0: i32) -> (i32, i32) {
    %c0_i32 = arith.constant 0 : i32
    %c0_i32_0 = arith.constant 0 : i32
    %c0_i32_1 = arith.constant 0 : i32
    return %c0_i32, %c0_i32_0 : i32, i32
  }
  func.func @transform_7(%arg0: i32) -> (i32, i32) {
    %c0_i32 = arith.constant 0 : i32
    %c0_i32_0 = arith.constant 0 : i32
    %c0_i32_1 = arith.constant 0 : i32
    return %c0_i32, %c0_i32_0 : i32, i32
  }
  func.func @transform_8(%arg0: i32) -> (i32, i32) {
    %c0_i32 = arith.constant 0 : i32
    %c0_i32_0 = arith.constant 0 : i32
    %c0_i32_1 = arith.constant 0 : i32
    return %c0_i32, %c0_i32_0 : i32, i32
  }
  func.func @transform_9(%arg0: i32) -> (i32, i32) {
    %c0_i32 = arith.constant 0 : i32
    %c0_i32_0 = arith.constant 0 : i32
    return %arg0, %c0_i32 : i32, i32
  }
}

</mosaic_0001>

<llo_original>
// kernel: cross_modal_embedding_alignment.1
$region0: #{cross_modal_embedding_alignment.1}
  #allocation0 [shape = 'u32[]', space=smem, size = 0x4, offset = 0x4, fixed_abs, tag = 'smem constant byte address 0x4 - core index']
  #allocation1 [shape = 'u32[72,128]{1,0:T(1,128)}', space=vmem, size = 0x9000, scoped, tag = 'internal scratch']
  %s0 = inlined_call_operand.vmem [shape: f32[16,48], index: 0, kind: input, shape index: {}]
  %s1 = inlined_call_operand.vmem [shape: f32[16,64], index: 1, kind: input, shape index: {}]
  %s2 = inlined_call_operand.vmem [shape: f32[16,48], index: 2, kind: input, shape index: {}]
  %s3 = inlined_call_operand.vmem [shape: f32[16,48], index: 3, kind: input, shape index: {}]
  %s4 = inlined_call_operand.vmem [shape: f32[48,32], index: 4, kind: input, shape index: {}]
  %s5 = inlined_call_operand.vmem [shape: f32[64,32], index: 5, kind: input, shape index: {}]
  %s6 = inlined_call_operand.vmem [shape: f32[48,32], index: 6, kind: input, shape index: {}]
  %s7 = inlined_call_operand.vmem [shape: f32[48,32], index: 7, kind: input, shape index: {}]
  %s8 = inlined_call_operand.vmem [shape: f32[16,32], index: 8, kind: input, shape index: {}]
  %s9 = inlined_call_operand.vmem [shape: f32[16,128], index: 9, kind: output, shape index: {}]
  %s10 = sld [smem:[#allocation0]]
  $region46: #{cross_modal_embedding_alignment.1} parent=0
    _
  %s12 = ssub.s32 1, %s10
  %s13 = scalar_select 0, %s12, %s10
  // Predicated region
  $region2: #{cross_modal_embedding_alignment.1} parent=0 // pred_check
    _
  $region3: #{cross_modal_embedding_alignment.1} parent=0 // pred_check_branch
    %15 = sbr.rel (0) target = $region5
  $region4: #{cross_modal_embedding_alignment.1} parent=0 // pred_region
    _
  $region5: #{cross_modal_embedding_alignment.1} parent=0 // pred_fallthru
    _
  // Predicated region
  $region6: #{cross_modal_embedding_alignment.1} parent=0 // pred_check
    _
  $region7: #{cross_modal_embedding_alignment.1} parent=0 // pred_check_branch
    %17 = sbr.rel (0) target = $region9
  $region8: #{cross_modal_embedding_alignment.1} parent=0 // pred_region
    _
  $region9: #{cross_modal_embedding_alignment.1} parent=0 // pred_fallthru
    _
  // Predicated region
  $region10: #{cross_modal_embedding_alignment.1} parent=0 // pred_check
    _
  $region11: #{cross_modal_embedding_alignment.1} parent=0 // pred_check_branch
    %19 = sbr.rel (0) target = $region13
  $region12: #{cross_modal_embedding_alignment.1} parent=0 // pred_region
    _
  $region13: #{cross_modal_embedding_alignment.1} parent=0 // pred_fallthru
    _
  // Predicated region
  $region14: #{cross_modal_embedding_alignment.1} parent=0 // pred_check
    _
  $region15: #{cross_modal_embedding_alignment.1} parent=0 // pred_check_branch
    %21 = sbr.rel (0) target = $region17
  $region16: #{cross_modal_embedding_alignment.1} parent=0 // pred_region
    _
  $region17: #{cross_modal_embedding_alignment.1} parent=0 // pred_fallthru
    _
  // Predicated region
  $region18: #{cross_modal_embedding_alignment.1} parent=0 // pred_check
    _
  $region19: #{cross_modal_embedding_alignment.1} parent=0 // pred_check_branch
    %23 = sbr.rel (0) target = $region21
  $region20: #{cross_modal_embedding_alignment.1} parent=0 // pred_region
    _
  $region21: #{cross_modal_embedding_alignment.1} parent=0 // pred_fallthru
    _
  // Predicated region
  $region22: #{cross_modal_embedding_alignment.1} parent=0 // pred_check
    _
  $region23: #{cross_modal_embedding_alignment.1} parent=0 // pred_check_branch
    %25 = sbr.rel (0) target = $region25
  $region24: #{cross_modal_embedding_alignment.1} parent=0 // pred_region
    _
  $region25: #{cross_modal_embedding_alignment.1} parent=0 // pred_fallthru
    _
  // Predicated region
  $region26: #{cross_modal_embedding_alignment.1} parent=0 // pred_check
    _
  $region27: #{cross_modal_embedding_alignment.1} parent=0 // pred_check_branch
    %27 = sbr.rel (0) target = $region29
  $region28: #{cross_modal_embedding_alignment.1} parent=0 // pred_region
    _
  $region29: #{cross_modal_embedding_alignment.1} parent=0 // pred_fallthru
    _
  // Predicated region
  $region30: #{cross_modal_embedding_alignment.1} parent=0 // pred_check
    _
  $region31: #{cross_modal_embedding_alignment.1} parent=0 // pred_check_branch
    %29 = sbr.rel (0) target = $region33
  $region32: #{cross_modal_embedding_alignment.1} parent=0 // pred_region
    _
  $region33: #{cross_modal_embedding_alignment.1} parent=0 // pred_fallthru
    _
  // Predicated region
  $region34: #{cross_modal_embedding_alignment.1} parent=0 // pred_check
    _
  $region35: #{cross_modal_embedding_alignment.1} parent=0 // pred_check_branch
    %31 = sbr.rel (0) target = $region37
  $region36: #{cross_modal_embedding_alignment.1} parent=0 // pred_region
    _
  $region37: #{cross_modal_embedding_alignment.1} parent=0 // pred_fallthru
    _
  %v32 = vld [vmem:[%s8] sm:$0xff]
  %v33 = vld [vmem:[%s8 + $0x8] sm:$0xff]
  %v34 = vld [vmem:[%s0] sm:$0xff]
  %v35 = vld [vmem:[%s0 + $0x8] sm:$0xff]
  %v36 = vld [vmem:[%s4] sm:$0xff]
  %v37 = vld [vmem:[%s4 + $0x8] sm:$0xff]
  %v38 = vld [vmem:[%s4 + $0x10] sm:$0xff]
  %v39 = vld [vmem:[%s4 + $0x18] sm:$0xff]
  %v40 = vld [vmem:[%s4 + $0x20] sm:$0xff]
  %v41 = vld [vmem:[%s4 + $0x28] sm:$0xff]
  %v42 = vperm.slane %v32, 0
  %vm43 = vcmask 392192
  %v45 = vsel %vm43, %v34, 0
  %v48 = vsel %vm43, %v35, 0
  %50 = vmatpush.msra.mxu0 0.0
  %51 = vmatpush.msra.mxu0 0.0
  %52 = vmatpush.msra.mxu0 0.0
  %53 = vmatpush.msra.mxu0 0.0
  %54 = vmatpush.msra.mxu0 0.0
  %55 = vmatpush.msra.mxu0 0.0
  %56 = vmatpush.msra.mxu0 0.0
  %57 = vmatpush.msra.mxu0 0.0
  %58 = vmatpush.msra.mxu0 0.0
  %59 = vmatpush.msra.mxu0 0.0
  %60 = vmatpush.msra.mxu0 %v41
  %61 = vmatpush.msra.mxu0 %v40
  %62 = vmatpush.msra.mxu0 %v39
  %63 = vmatpush.msra.mxu0 %v38
  %64 = vmatpush.msra.mxu0 %v37
  %65 = vmatpush.msra.mxu0 %v36
  %66 = vmatmul.f32.gmra.mxu0 %v45
  %v67 = vpop.f32.mrf.mxu0
  %v68 = vadd.f32 %v42, %v67
  %69 = vmatmul.f32.gmra.mxu0 %v48
  %v70 = vpop.f32.mrf.mxu0
  %v71 = vadd.f32 %v42, %v70
  %72 = vdwg.mxu0
  %v73 = vmul.f32 %v68, %v68
  %v74 = vmul.f32 %v71, %v71
  %vm75 = vcmask 261120
  %v76 = vsel %vm75, %v73, 0.0
  %77 = vadd.xlane.f32.xlu0 %v76
  %v78 = vpop.xlane.xlu0 %77
  %v79 = vsel %vm75, %v74, 0.0
  %80 = vadd.xlane.f32.xlu0 %v79
  %v81 = vpop.xlane.xlu0 %80
  %v82 = vmax.f32 %v78, 1e-24
  %v83 = vmax.f32 %v81, 1e-24
  %v84 = vrsqrt.pop %v82
  %v85 = vmul.f32 %v84, %v82
  %v86 = vmul.f32 %v85, %v84
  %v87 = vmul.f32 0.5, %v86
  %v88 = vsub.f32 1.5, %v87
  %v89 = vmul.f32 %v84, %v88
  %vm90 = vweird.f32 %v82
  %vm91 = vweird.f32 %v84
  %vm92 = vmor %vm90, %vm91
  %v93 = vsel %vm92, %v84, %v89
  %v94 = vrsqrt.pop %v83
  %v95 = vmul.f32 %v94, %v83
  %v96 = vmul.f32 %v95, %v94
  %v97 = vmul.f32 0.5, %v96
  %v98 = vsub.f32 1.5, %v97
  %v99 = vmul.f32 %v94, %v98
  %vm100 = vweird.f32 %v83
  %vm101 = vweird.f32 %v94
  %vm102 = vmor %vm100, %vm101
  %v103 = vsel %vm102, %v94, %v99
  %v104 = vmul.f32 %v68, %v93
  %v105 = vmul.f32 %v71, %v103
  %v106 = vld [vmem:[%s1] sm:$0xff]
  %v107 = vld [vmem:[%s1 + $0x8] sm:$0xff]
  %v108 = vld [vmem:[%s5] sm:$0xff]
  %v109 = vld [vmem:[%s5 + $0x8] sm:$0xff]
  %v110 = vld [vmem:[%s5 + $0x10] sm:$0xff]
  %v111 = vld [vmem:[%s5 + $0x18] sm:$0xff]
  %v112 = vld [vmem:[%s5 + $0x20] sm:$0xff]
  %v113 = vld [vmem:[%s5 + $0x28] sm:$0xff]
  %v114 = vld [vmem:[%s5 + $0x30] sm:$0xff]
  %v115 = vld [vmem:[%s5 + $0x38] sm:$0xff]
  %v116 = vperm.slane %v32, 3
  %vm117 = vcmask 523264
  %v119 = vsel %vm117, %v106, 0
  %v122 = vsel %vm117, %v107, 0
  %124 = vmatpush.msra.mxu0 0.0
  %125 = vmatpush.msra.mxu0 0.0
  %126 = vmatpush.msra.mxu0 0.0
  %127 = vmatpush.msra.mxu0 0.0
  %128 = vmatpush.msra.mxu0 0.0
  %129 = vmatpush.msra.mxu0 0.0
  %130 = vmatpush.msra.mxu0 0.0
  %131 = vmatpush.msra.mxu0 0.0
  %132 = vmatpush.msra.mxu0 %v115
  %133 = vmatpush.msra.mxu0 %v114
  %134 = vmatpush.msra.mxu0 %v113
  %135 = vmatpush.msra.mxu0 %v112
  %136 = vmatpush.msra.mxu0 %v111
  %137 = vmatpush.msra.mxu0 %v110
  %138 = vmatpush.msra.mxu0 %v109
  %139 = vmatpush.msra.mxu0 %v108
  %140 = vmatmul.f32.gmra.mxu0 %v119
  %v141 = vpop.f32.mrf.mxu0
  %v142 = vadd.f32 %v116, %v141
  %143 = vmatmul.f32.gmra.mxu0 %v122
  %v144 = vpop.f32.mrf.mxu0
  %v145 = vadd.f32 %v116, %v144
  %146 = vdwg.mxu0
  %v147 = vmul.f32 %v142, %v142
  %v148 = vmul.f32 %v145, %v145
  %v149 = vsel %vm75, %v147, 0.0
  %150 = vadd.xlane.f32.xlu0 %v149
  %v151 = vpop.xlane.xlu0 %150
  %v152 = vsel %vm75, %v148, 0.0
  %153 = vadd.xlane.f32.xlu0 %v152
  %v154 = vpop.xlane.xlu0 %153
  %v155 = vmax.f32 %v151, 1e-24
  %v156 = vmax.f32 %v154, 1e-24
  %v157 = vrsqrt.pop %v155
  %v158 = vmul.f32 %v157, %v155
  %v159 = vmul.f32 %v158, %v157
  %v160 = vmul.f32 0.5, %v159
  %v161 = vsub.f32 1.5, %v160
  %v162 = vmul.f32 %v157, %v161
  %vm163 = vweird.f32 %v155
  %vm164 = vweird.f32 %v157
  %vm165 = vmor %vm163, %vm164
  %v166 = vsel %vm165, %v157, %v162
  %v167 = vrsqrt.pop %v156
  %v168 = vmul.f32 %v167, %v156
  %v169 = vmul.f32 %v168, %v167
  %v170 = vmul.f32 0.5, %v169
  %v171 = vsub.f32 1.5, %v170
  %v172 = vmul.f32 %v167, %v171
  %vm173 = vweird.f32 %v156
  %vm174 = vweird.f32 %v167
  %vm175 = vmor %vm173, %vm174
  %v176 = vsel %vm175, %v167, %v172
  %v177 = vmul.f32 %v142, %v166
  %v178 = vmul.f32 %v145, %v176
  %v179 = vld [vmem:[%s2] sm:$0xff]
  %v180 = vld [vmem:[%s2 + $0x8] sm:$0xff]
  %v181 = vld [vmem:[%s6] sm:$0xff]
  %v182 = vld [vmem:[%s6 + $0x8] sm:$0xff]
  %v183 = vld [vmem:[%s6 + $0x10] sm:$0xff]
  %v184 = vld [vmem:[%s6 + $0x18] sm:$0xff]
  %v185 = vld [vmem:[%s6 + $0x20] sm:$0xff]
  %v186 = vld [vmem:[%s6 + $0x28] sm:$0xff]
  %v187 = vperm.slane %v32, 6
  %v189 = vsel %vm43, %v179, 0
  %v192 = vsel %vm43, %v180, 0
  %194 = vmatpush.msra.mxu0 0.0
  %195 = vmatpush.msra.mxu0 0.0
  %196 = vmatpush.msra.mxu0 0.0
  %197 = vmatpush.msra.mxu0 0.0
  %198 = vmatpush.msra.mxu0 0.0
  %199 = vmatpush.msra.mxu0 0.0
  %200 = vmatpush.msra.mxu0 0.0
  %201 = vmatpush.msra.mxu0 0.0
  %202 = vmatpush.msra.mxu0 0.0
  %203 = vmatpush.msra.mxu0 0.0
  %204 = vmatpush.msra.mxu0 %v186
  %205 = vmatpush.msra.mxu0 %v185
  %206 = vmatpush.msra.mxu0 %v184
  %207 = vmatpush.msra.mxu0 %v183
  %208 = vmatpush.msra.mxu0 %v182
  %209 = vmatpush.msra.mxu0 %v181
  %210 = vmatmul.f32.gmra.mxu0 %v189
  %v211 = vpop.f32.mrf.mxu0
  %v212 = vadd.f32 %v187, %v211
  %213 = vmatmul.f32.gmra.mxu0 %v192
  %v214 = vpop.f32.mrf.mxu0
  %v215 = vadd.f32 %v187, %v214
  %216 = vdwg.mxu0
  %v217 = vmul.f32 %v212, %v212
  %v218 = vmul.f32 %v215, %v215
  %v219 = vsel %vm75, %v217, 0.0
  %220 = vadd.xlane.f32.xlu0 %v219
  %v221 = vpop.xlane.xlu0 %220
  %v222 = vsel %vm75, %v218, 0.0
  %223 = vadd.xlane.f32.xlu0 %v222
  %v224 = vpop.xlane.xlu0 %223
  %v225 = vmax.f32 %v221, 1e-24
  %v226 = vmax.f32 %v224, 1e-24
  %v227 = vrsqrt.pop %v225
  %v228 = vmul.f32 %v227, %v225
  %v229 = vmul.f32 %v228, %v227
  %v230 = vmul.f32 0.5, %v229
  %v231 = vsub.f32 1.5, %v230
  %v232 = vmul.f32 %v227, %v231
  %vm233 = vweird.f32 %v225
  %vm234 = vweird.f32 %v227
  %vm235 = vmor %vm233, %vm234
  %v236 = vsel %vm235, %v227, %v232
  %v237 = vrsqrt.pop %v226
  %v238 = vmul.f32 %v237, %v226
  %v239 = vmul.f32 %v238, %v237
  %v240 = vmul.f32 0.5, %v239
  %v241 = vsub.f32 1.5, %v240
  %v242 = vmul.f32 %v237, %v241
  %vm243 = vweird.f32 %v226
  %vm244 = vweird.f32 %v237
  %vm245 = vmor %vm243, %vm244
  %v246 = vsel %vm245, %v237, %v242
  %v247 = vmul.f32 %v212, %v236
  %v248 = vmul.f32 %v215, %v246
  %v249 = vld [vmem:[%s3] sm:$0xff]
  %v250 = vld [vmem:[%s3 + $0x8] sm:$0xff]
  %v251 = vld [vmem:[%s7] sm:$0xff]
  %v252 = vld [vmem:[%s7 + $0x8] sm:$0xff]
  %v253 = vld [vmem:[%s7 + $0x10] sm:$0xff]
  %v254 = vld [vmem:[%s7 + $0x18] sm:$0xff]
  %v255 = vld [vmem:[%s7 + $0x20] sm:$0xff]
  %v256 = vld [vmem:[%s7 + $0x28] sm:$0xff]
  %v257 = vperm.slane %v33, 1
  %v259 = vsel %vm43, %v249, 0
  %v262 = vsel %vm43, %v250, 0
  %264 = vmatpush.msra.mxu0 0.0
  %265 = vmatpush.msra.mxu0 0.0
  %266 = vmatpush.msra.mxu0 0.0
  %267 = vmatpush.msra.mxu0 0.0
  %268 = vmatpush.msra.mxu0 0.0
  %269 = vmatpush.msra.mxu0 0.0
  %270 = vmatpush.msra.mxu0 0.0
  %271 = vmatpush.msra.mxu0 0.0
  %272 = vmatpush.msra.mxu0 0.0
  %273 = vmatpush.msra.mxu0 0.0
  %274 = vmatpush.msra.mxu0 %v256
  %275 = vmatpush.msra.mxu0 %v255
  %276 = vmatpush.msra.mxu0 %v254
  %277 = vmatpush.msra.mxu0 %v253
  %278 = vmatpush.msra.mxu0 %v252
  %279 = vmatpush.msra.mxu0 %v251
  %280 = vmatmul.f32.gmra.mxu0 %v259
  %v281 = vpop.f32.mrf.mxu0
  %v282 = vadd.f32 %v257, %v281
  %283 = vmatmul.f32.gmra.mxu0 %v262
  %v284 = vpop.f32.mrf.mxu0
  %v285 = vadd.f32 %v257, %v284
  %286 = vdwg.mxu0
  %v287 = vsel %vm75, %v282, 0.0
  %288 = vadd.xlane.f32.xlu0 %v287
  %v289 = vpop.xlane.xlu0 %288
  %v290 = vsel %vm75, %v285, 0.0
  %291 = vadd.xlane.f32.xlu0 %v290
  %v292 = vpop.xlane.xlu0 %291
  %v293 = vmul.f32 %v289, 0.03125
  %v294 = vmul.f32 %v292, 0.03125
  %v295 = vsub.f32 %v282, %v293
  %v296 = vsub.f32 %v285, %v294
  %v297 = vmul.f32 %v295, %v295
  %v298 = vmul.f32 %v296, %v296
  %v299 = vsel %vm75, %v297, 0.0
  %300 = vadd.xlane.f32.xlu0 %v299
  %v301 = vpop.xlane.xlu0 %300
  %v302 = vsel %vm75, %v298, 0.0
  %303 = vadd.xlane.f32.xlu0 %v302
  %v304 = vpop.xlane.xlu0 %303
  %v305 = vmul.f32 %v301, 0.03125
  %v306 = vmul.f32 %v304, 0.03125
  %v307 = vadd.f32 %v305, 1e-05
  %v308 = vadd.f32 %v306, 1e-05
  %v309 = vrsqrt.pop %v307
  %v310 = vmul.f32 %v309, %v307
  %v311 = vmul.f32 %v310, %v309
  %v312 = vmul.f32 0.5, %v311
  %v313 = vsub.f32 1.5, %v312
  %v314 = vmul.f32 %v309, %v313
  %vm315 = vweird.f32 %v307
  %vm316 = vweird.f32 %v309
  %vm317 = vmor %vm315, %vm316
  %v318 = vsel %vm317, %v309, %v314
  %v319 = vrsqrt.pop %v308
  %v320 = vmul.f32 %v319, %v308
  %v321 = vmul.f32 %v320, %v319
  %v322 = vmul.f32 0.5, %v321
  %v323 = vsub.f32 1.5, %v322
  %v324 = vmul.f32 %v319, %v323
  %vm325 = vweird.f32 %v308
  %vm326 = vweird.f32 %v319
  %vm327 = vmor %vm325, %vm326
  %v328 = vsel %vm327, %v319, %v324
  %v329 = vmul.f32 %v295, %v318
  %v330 = vmul.f32 %v296, %v328
  %v331 = vperm.slane %v33, 2
  %v332 = vmul.f32 %v329, %v331
  %v333 = vmul.f32 %v330, %v331
  %v334 = vperm.slane %v33, 3
  %v335 = vadd.f32 %v332, %v334
  %v336 = vadd.f32 %v333, %v334
  %339 = vrot.lane.b32.xlu0 %v177, 32
  %v340 = vpop.permute.xlu0 %339
  %341 = vrot.lane.b32.xlu0 %v178, 32
  %v342 = vpop.permute.xlu0 %341
  %347 = vrot.lane.b32.xlu0 %v247, 64
  %v348 = vpop.permute.xlu0 %347
  %349 = vrot.lane.b32.xlu0 %v248, 64
  %v350 = vpop.permute.xlu0 %349
  %355 = vrot.lane.b32.xlu0 %v335, 96
  %v356 = vpop.permute.xlu0 %355
  %357 = vrot.lane.b32.xlu0 %v336, 96
  %v358 = vpop.permute.xlu0 %357
  %v361 = vsel %vm75, %v104, %v340
  %v362 = vsel %vm75, %v105, %v342
  %v363 = vsel %vm117, %v361, %v348
  %v364 = vsel %vm117, %v362, %v350
  %vm365 = vcmask 785408
  %v366 = vsel %vm365, %v363, %v356
  %v367 = vsel %vm365, %v364, %v358
  %368 = vst [vmem:[%s9] sm:$0xff] %v366
  %369 = vst [vmem:[%s9 + $0x8] sm:$0xff] %v367
  // Predicated region
  $region38: #{cross_modal_embedding_alignment.1} parent=0 // pred_check
    _
  $region39: #{cross_modal_embedding_alignment.1} parent=0 // pred_check_branch
    %371 = sbr.rel (0) target = $region41
  $region40: #{cross_modal_embedding_alignment.1} parent=0 // pred_region
    _
  $region41: #{cross_modal_embedding_alignment.1} parent=0 // pred_fallthru
    _
  // Predicated region
  $region42: #{cross_modal_embedding_alignment.1} parent=0 // pred_check
    _
  $region43: #{cross_modal_embedding_alignment.1} parent=0 // pred_check_branch
    %373 = sbr.rel (0) target = $region45
  $region44: #{cross_modal_embedding_alignment.1} parent=0 // pred_region
    _
  $region45: #{cross_modal_embedding_alignment.1} parent=0 // pred_fallthru
    _

</llo_original>
